<compile_context>
chip_gen: v7x
topology: tpu7x:2x2x1
jax: 0.10.0
libtpu: 0.0.40
codegen_flags: <defaults>
</compile_context>

<pallas_src>
import math

import numpy as np
import jax
import jax.numpy as jnp
from jax.experimental import pallas as pl
from jax.experimental.pallas import tpu as pltpu


def _upsample_matrix(ts: int, W: int) -> jnp.ndarray:
    """One-hot (ts//4, ts) matrix U with U[j, k] = 1 iff flat output position k of a
    row-pair-aligned output tile (shape (2*rp, 2*W) flattened) is the nearest-neighbour
    copy of flat position j of the matching x tile (shape (rp, W) flattened)."""
    W2 = 2 * W
    tsx = ts // 4
    k = np.arange(ts)
    out_row = k // W2
    out_col = k % W2
    src = (out_row // 2) * W + (out_col // 2)          # source flat index in x tile
    U = (np.arange(tsx)[:, None] == src[None, :]).astype(np.float32)
    return jnp.asarray(U)


def _pick_tile(S2: int, W2: int, C_pyr: int, C_skip: int) -> int:
    """Output-pixel tile size: row-pair aligned, lane aligned (ts % 512 == 0 unless the
    tile covers the whole image), capped so streaming buffers + U stay << 48 MiB."""
    per_col = 4 * (2 * C_skip + 3 * C_pyr)             # double-buffered skip/out + x/4
    max_ts = min(2048, max(512, (24 * 1024 * 1024) // max(per_col, 1)))
    if S2 <= max_ts:
        return S2                                      # single tile: full-dim blocks
    unit = 2 * W2                                      # one output row pair, flattened
    align = 512 // math.gcd(unit, 512)                 # ts % 512 == 0  => ts, ts//4 lane aligned
    ts_unit = unit * align
    ts = (max_ts // ts_unit) * ts_unit
    if ts == 0:
        ts = ts_unit
    return min(ts, S2)


def fpn_block_forward(x, skip, weight, bias):
    """x:      (N, C_pyr,  H,  W)  float32  (NCHW, like PyTorch)
       skip:   (N, C_skip, 2H, 2W) float32
       weight: (C_pyr, C_skip, 1, 1), bias: (C_pyr,)
       returns (N, C_pyr, 2H, 2W)"""
    N, C_pyr, H, W = x.shape
    Ns, C_skip, H2, W2 = skip.shape
    assert Ns == N and H2 == 2 * H and W2 == 2 * W
    S1, S2 = H * W, H2 * W2

    # Free, layout-preserving reshapes only (contiguous trailing-dim collapse).
    x3 = x.reshape(N, C_pyr, S1).astype(jnp.float32)
    skip3 = skip.reshape(N, C_skip, S2).astype(jnp.float32)
    w2 = weight[:, :, 0, 0].astype(jnp.float32)        # (C_pyr, C_skip)
    b2 = bias.reshape(C_pyr, 1).astype(jnp.float32)    # (C_pyr, 1)

    ts = _pick_tile(S2, W2, C_pyr, C_skip)
    tsx = ts // 4
    U = _upsample_matrix(ts, W)                        # (tsx, ts), resident in VMEM

    num_tiles = pl.cdiv(S2, ts)
    needs_mask = (S2 % ts) != 0

    def kernel(x_ref, skip_ref, w_ref, b_ref, u_ref, o_ref):
        # x_ref: (1, C_pyr, tsx)   skip_ref: (1, C_skip, ts)
        # w_ref: (C_pyr, C_skip)   b_ref: (C_pyr, 1)   u_ref: (tsx, ts)
        # o_ref: (1, C_pyr, ts)
        xt = x_ref[0]                                              # (C_pyr, tsx)
        if needs_mask:
            # Zero out-of-bounds tail columns so garbage cannot leak through the
            # replication matmul; out-of-bounds output columns are dropped on write.
            i = pl.program_id(1)
            col = jax.lax.broadcasted_iota(jnp.int32, xt.shape, 1)
            xt = jnp.where(col < (S1 - i * tsx), xt, 0.0)
        # 1x1 conv: channels contract, spatial stays on lanes.
        conv = jnp.dot(w_ref[...], skip_ref[0],
                       preferred_element_type=jnp.float32)         # (C_pyr, ts)
        # Nearest-neighbour 2x upsample as a one-hot MXU matmul (exact replication).
        up = jnp.dot(xt, u_ref[...],
                     preferred_element_type=jnp.float32)           # (C_pyr, ts)
        o_ref[0] = (up + conv + b_ref[...]).astype(o_ref.dtype)

    out3 = pl.pallas_call(
        kernel,
        out_shape=jax.ShapeDtypeStruct((N, C_pyr, S2), x.dtype),
        grid=(N, num_tiles),
        in_specs=[
            pl.BlockSpec((1, C_pyr, tsx), lambda n, i: (n, 0, i)),   # x rows (1/4 size)
            pl.BlockSpec((1, C_skip, ts), lambda n, i: (n, 0, i)),   # skip columns
            pl.BlockSpec((C_pyr, C_skip), lambda n, i: (0, 0)),      # conv weight (resident)
            pl.BlockSpec((C_pyr, 1), lambda n, i: (0, 0)),           # conv bias   (resident)
            pl.BlockSpec((tsx, ts), lambda n, i: (0, 0)),            # upsample matrix (resident)
        ],
        out_specs=pl.BlockSpec((1, C_pyr, ts), lambda n, i: (n, 0, i)),
        compiler_params=pltpu.CompilerParams(
            dimension_semantics=("parallel", "parallel"),
            vmem_limit_bytes=48 * 1024 * 1024,
        ),
    )(x3, skip3, w2, b2, U)

    return out3.reshape(N, C_pyr, H2, W2)


def reference_forward(x, skip, weight, bias):
    """Pure-JAX reference matching the PyTorch module semantics (NCHW)."""
    x_up = jnp.repeat(jnp.repeat(x, 2, axis=2), 2, axis=3)
    conv = jnp.einsum('nchw,oc->nohw', skip, weight[:, :, 0, 0]) \
        + bias[None, :, None, None]
    return x_up + conv


if __name__ == "__main__":
    key = jax.random.PRNGKey(0)
    k_x, k_s, k_w, k_b = jax.random.split(key, 4)

    N, C_pyr, C_skip, H, W = 2, 8, 4, 16, 16
    x = jax.random.normal(k_x, (N, C_pyr, H, W), dtype=jnp.float32)
    skip = jax.random.normal(k_s, (N, C_skip, 2 * H, 2 * W), dtype=jnp.float32)

    # Deterministic synthetic conv params (shapes from nn.Conv2d(skip, pyr, 1))
    weight = jax.random.normal(k_w, (C_pyr, C_skip, 1, 1), dtype=jnp.float32) * 0.1
    bias = jax.random.normal(k_b, (C_pyr,), dtype=jnp.float32) * 0.1

    out = fpn_block_forward(x, skip, weight, bias)
    out = jax.block_until_ready(out)

    ref = reference_forward(x, skip, weight, bias)
    assert out.shape == (N, C_pyr, 2 * H, 2 * W), out.shape
    assert jnp.allclose(out, ref, atol=1e-5, rtol=1e-5), "mismatch vs reference"

    print("KERNEL_OK")
</pallas_src>

<mosaic_0001>
module attributes {stable_mosaic.version = 11 : i64} {
  func.func @kernel(%arg0: i32, %arg1: i32, %arg2: memref<1x8x256xf32, #tpu.memory_space<vmem>>, %arg3: memref<1x4x1024xf32, #tpu.memory_space<vmem>>, %arg4: memref<8x4xf32, #tpu.memory_space<vmem>>, %arg5: memref<8x1xf32, #tpu.memory_space<vmem>>, %arg6: memref<256x1024xf32, #tpu.memory_space<vmem>>, %arg7: memref<1x8x1024xf32, #tpu.memory_space<vmem>>) attributes {dimension_semantics = [#tpu.dimension_semantics<parallel>, #tpu.dimension_semantics<parallel>], iteration_bounds = array<i64: 2, 1>, scalar_prefetch = 0 : i64, scratch_operands = 0 : i64, tpu.core_type = #tpu.core_type<tc>, window_params = [{transform_indices = @transform_0, window_bounds = array<i64: 1, 8, 256>}, {transform_indices = @transform_1, window_bounds = array<i64: 1, 4, 1024>}, {pipeline_mode = #tpu.pipeline_mode<synchronous>, transform_indices = @transform_2, window_bounds = array<i64: 8, 4>}, {pipeline_mode = #tpu.pipeline_mode<synchronous>, transform_indices = @transform_3, window_bounds = array<i64: 8, 1>}, {pipeline_mode = #tpu.pipeline_mode<synchronous>, transform_indices = @transform_4, window_bounds = array<i64: 256, 1024>}, {transform_indices = @transform_5, window_bounds = array<i64: 1, 8, 1024>}]} {
    %c0 = arith.constant 0 : index
    %c0_0 = arith.constant 0 : index
    %c0_1 = arith.constant 0 : index
    %0 = vector.load %arg2[%c0, %c0_0, %c0_1] : memref<1x8x256xf32, #tpu.memory_space<vmem>>, vector<1x8x256xf32>
    %1 = vector.shape_cast %0 : vector<1x8x256xf32> to vector<8x256xf32>
    %c0_2 = arith.constant 0 : index
    %c0_3 = arith.constant 0 : index
    %2 = vector.load %arg4[%c0_2, %c0_3] : memref<8x4xf32, #tpu.memory_space<vmem>>, vector<8x4xf32>
    %c0_4 = arith.constant 0 : index
    %c0_5 = arith.constant 0 : index
    %c0_6 = arith.constant 0 : index
    %3 = vector.load %arg3[%c0_4, %c0_5, %c0_6] : memref<1x4x1024xf32, #tpu.memory_space<vmem>>, vector<1x4x1024xf32>
    %4 = vector.shape_cast %3 : vector<1x4x1024xf32> to vector<4x1024xf32>
    %cst = arith.constant dense<0.000000e+00> : vector<8x1024xf32>
    %5 = tpu.matmul %2, %4, %cst {dimension_numbers = #tpu.dot_dimension_numbers<[1], [0], [0], [1], [0, 0, 1, 1], [], []>} : vector<8x4xf32>, vector<4x1024xf32>, vector<8x1024xf32> -> vector<8x1024xf32>
    %c0_7 = arith.constant 0 : index
    %c0_8 = arith.constant 0 : index
    %6 = vector.load %arg6[%c0_7, %c0_8] : memref<256x1024xf32, #tpu.memory_space<vmem>>, vector<256x1024xf32>
    %cst_9 = arith.constant dense<0.000000e+00> : vector<8x1024xf32>
    %7 = tpu.matmul %1, %6, %cst_9 {dimension_numbers = #tpu.dot_dimension_numbers<[1], [0], [0], [1], [0, 0, 1, 1], [], []>} : vector<8x256xf32>, vector<256x1024xf32>, vector<8x1024xf32> -> vector<8x1024xf32>
    %8 = arith.addf %7, %5 : vector<8x1024xf32>
    %c0_10 = arith.constant 0 : index
    %c0_11 = arith.constant 0 : index
    %9 = vector.load %arg5[%c0_10, %c0_11] : memref<8x1xf32, #tpu.memory_space<vmem>>, vector<8x1xf32>
    %10 = vector.broadcast %9 : vector<8x1xf32> to vector<8x1024xf32>
    %11 = arith.addf %8, %10 : vector<8x1024xf32>
    %c0_12 = arith.constant 0 : index
    %c0_13 = arith.constant 0 : index
    %c0_14 = arith.constant 0 : index
    %12 = vector.load %arg7[%c0_12, %c0_13, %c0_14] : memref<1x8x1024xf32, #tpu.memory_space<vmem>>, vector<1x8x1024xf32>
    %13 = vector.shape_cast %12 : vector<1x8x1024xf32> to vector<8x1024xf32>
    %14 = vector.shape_cast %11 : vector<8x1024xf32> to vector<1x8x1024xf32>
    tpu.vector_store %arg7[%c0_12, %c0_13, %c0_14], %14 {strides = array<i32>} : memref<1x8x1024xf32, #tpu.memory_space<vmem>>, vector<1x8x1024xf32>,
    return
  }
  func.func @transform_0(%arg0: i32, %arg1: i32) -> (i32, i32, i32) {
    %c0_i32 = arith.constant 0 : i32
    %c0_i32_0 = arith.constant 0 : i32
    return %arg0, %c0_i32, %arg1 : i32, i32, i32
  }
  func.func @transform_1(%arg0: i32, %arg1: i32) -> (i32, i32, i32) {
    %c0_i32 = arith.constant 0 : i32
    %c0_i32_0 = arith.constant 0 : i32
    return %arg0, %c0_i32, %arg1 : i32, i32, i32
  }
  func.func @transform_2(%arg0: i32, %arg1: i32) -> (i32, i32) {
    %c0_i32 = arith.constant 0 : i32
    %c0_i32_0 = arith.constant 0 : i32
    %c0_i32_1 = arith.constant 0 : i32
    return %c0_i32, %c0_i32_0 : i32, i32
  }
  func.func @transform_3(%arg0: i32, %arg1: i32) -> (i32, i32) {
    %c0_i32 = arith.constant 0 : i32
    %c0_i32_0 = arith.constant 0 : i32
    %c0_i32_1 = arith.constant 0 : i32
    return %c0_i32, %c0_i32_0 : i32, i32
  }
  func.func @transform_4(%arg0: i32, %arg1: i32) -> (i32, i32) {
    %c0_i32 = arith.constant 0 : i32
    %c0_i32_0 = arith.constant 0 : i32
    %c0_i32_1 = arith.constant 0 : i32
    return %c0_i32, %c0_i32_0 : i32, i32
  }
  func.func @transform_5(%arg0: i32, %arg1: i32) -> (i32, i32, i32) {
    %c0_i32 = arith.constant 0 : i32
    %c0_i32_0 = arith.constant 0 : i32
    return %arg0, %c0_i32, %arg1 : i32, i32, i32
  }
}

</mosaic_0001>

<llo_original>
// kernel: tpu_custom_call.1
$region0: #{tpu_custom_call.1}
  #allocation0 [shape = 'u32[]', space=smem, size = 0x4, offset = 0x4, fixed_abs, tag = 'smem constant byte address 0x4 - core index']
  #allocation1 [shape = 'u32[144,128]{1,0:T(1,128)}', space=vmem, size = 0x12000, scoped, tag = 'internal scratch']
  %s0 = inlined_call_operand.hbm [shape: f32[2,8,256], index: 0, kind: input, shape index: {}]
  %s1 = inlined_call_operand.hbm [shape: f32[2,4,1024], index: 1, kind: input, shape index: {}]
  %s2 = inlined_call_operand.vmem [shape: f32[8,4], index: 2, kind: input, shape index: {}]
  %s3 = inlined_call_operand.vmem [shape: f32[8,1], index: 3, kind: input, shape index: {}]
  %s4 = inlined_call_operand.hbm [shape: f32[256,1024], index: 4, kind: input, shape index: {}]
  %s5 = inlined_call_operand.hbm [shape: f32[2,8,1024], index: 5, kind: output, shape index: {}]
  %s6 = sld [smem:[#allocation0]]
  $region65: #{tpu_custom_call.1} parent=0
    _
  %s8 = ssub.s32 1, %s6
  %s9 = scalar_select 0, %s8, %s6
  $region1: #{tpu_custom_call.1} parent=0
    #allocation2 [shape = 'u8[16384]{0}', space=vmem, size = 0x4000, scoped, tag = 'input window, operand 0']
    #allocation3 [shape = 's32[2]{0}', space=sflag, size = 0x8, scoped, tag = 'scoped memory for tpu_custom_call.1']
    #allocation4 [shape = 's32[2]{0}', space=sflag, size = 0x8, scoped, tag = 'scoped memory for tpu_custom_call.1']
    #allocation5 [shape = 'u8[32768]{0}', space=vmem, size = 0x8000, scoped, tag = 'input window, operand 1']
    #allocation6 [shape = 's32[2]{0}', space=sflag, size = 0x8, scoped, tag = 'scoped memory for tpu_custom_call.1']
    #allocation7 [shape = 'u8[1048576]{0}', space=vmem, size = 0x100000, scoped, tag = 'input window, operand 4, single buffered']
    #allocation8 [shape = 'u8[65536]{0}', space=vmem, size = 0x10000, scoped, tag = 'output window, operand 0']
    %10 = vsyncpa [#allocation3], 0
    %s11 = scalar_lea.sflag [#allocation3], 1
    %12 = vsyncpa %s11, 0
    %13 = vsyncpa [#allocation6], 0
    %s14 = scalar_lea.sflag [#allocation6], 1
    %15 = vsyncpa %s14, 0
    %16 = vsyncpa [#allocation4], 0
    %s17 = scalar_lea.sflag [#allocation4], 1
    %18 = vsyncpa %s17, 0
    loop: start=0, step=1, limit=4
    $region2: #{tpu_custom_call.1} parent=1 // loop_pre_header
      _
    $region3: #{tpu_custom_call.1} parent=1 // loop_header
      %s20 = sphi 0, %s24
      %p21 = scmp.ge.s32.totalorder %s20, 4
      %s27 = sphi 0, %s39
      %s28 = sphi 0, %s35
      %s29 = sphi 0, %s27
      %s30 = sphi 0, %s28
      %s31 = sphi 0, %s29
      %s32 = sphi 0, %s30
      %s44 = sphi 0, %s46
      %s47 = sphi 0, %s44
      %s48 = sphi 0, %s47
      %s64 = sphi 0, %s48
      %s72 = sphi 0, %s74
      %s75 = sphi 0, %s72
      %s76 = sphi 0, %s75
      %s92 = sphi 0, %s76
      %s96 = sphi 0, %s96
      %s98 = sphi 0, %s96
      %s99 = sphi 0, %s98
      %s113 = sphi 0, %s99
      %s117 = sphi 0, %s117
      %s119 = sphi 0, %s117
      %s120 = sphi 0, %s119
      %s134 = sphi 0, %s120
      %s138 = sphi 0, %s138
      %s140 = sphi 0, %s138
      %s141 = sphi 0, %s140
      %s155 = sphi 0, %s141
      %s163 = sphi 0, %s165
      %s166 = sphi 0, %s163
      %s167 = sphi 0, %s166
      %s183 = sphi 0, %s167
    $region4: #{tpu_custom_call.1} parent=1 // loop_header_branch
      %23 = sbr.rel (%p21) target = $region8
    $region5: #{tpu_custom_call.1} parent=1 // loop_body
      %s25 = ssub.s32 %s20, 1
      %s26 = ssub.s32 %s20, 2
      %s33 = sadd.s32 1, %s28
      %p34 = scmp.ge.s32.totalorder %s33, 1
      %s35 = scalar_select %p34, 0, %s33
      %s36 = sadd.s32 1, %s27
      %s37 = scalar_select %p34, %s36, %s27
      %p38 = scmp.ge.s32.totalorder %s37, 2
      %s39 = scalar_select %p38, 0, %s37
      %s40 = ssub.s32 %s27, %s39
      %s41 = ssub.s32 %s28, %s35
      %s42 = sor.u32 %s40, %s41
      %p43 = scmp.eq.s32.totalorder %s42, 0
      %s45 = sadd.s32 %s44, 1
      %s46 = scalar_select %p43, %s44, %s45
      %p49 = pneg %p43
      %p50 = scmp.eq.s32.totalorder %s20, 1
      %p51 = por %p49, %p50
      %p52 = scmp.ne.s32.totalorder %s44, %s47
      %p53 = scmp.eq.s32.totalorder %s20, 0
      %p54 = por %p52, %p53
      %p55 = scmp.ne.s32.totalorder %s44, %s47
      %p56 = scmp.eq.s32.totalorder %s25, 1
      %p57 = por %p55, %p56
      %p58 = scmp.ne.s32.totalorder %s47, %s48
      %p59 = scmp.eq.s32.totalorder %s25, 0
      %p60 = por %p58, %p59
      %p61 = scmp.ne.s32.totalorder %s47, %s48
      %p62 = scmp.eq.s32.totalorder %s26, 1
      %p63 = por %p61, %p62
      %p65 = scmp.ne.s32.totalorder %s48, %s64
      %p66 = scmp.eq.s32.totalorder %s26, 0
      %p67 = por %p65, %p66
      %s68 = ssub.s32 %s27, %s39
      %s69 = ssub.s32 %s28, %s35
      %s70 = sor.u32 %s68, %s69
      %p71 = scmp.eq.s32.totalorder %s70, 0
      %s73 = sadd.s32 %s72, 1
      %s74 = scalar_select %p71, %s72, %s73
      %p77 = pneg %p71
      %p78 = scmp.eq.s32.totalorder %s20, 1
      %p79 = por %p77, %p78
      %p80 = scmp.ne.s32.totalorder %s72, %s75
      %p81 = scmp.eq.s32.totalorder %s20, 0
      %p82 = por %p80, %p81
      %p83 = scmp.ne.s32.totalorder %s72, %s75
      %p84 = scmp.eq.s32.totalorder %s25, 1
      %p85 = por %p83, %p84
      %p86 = scmp.ne.s32.totalorder %s75, %s76
      %p87 = scmp.eq.s32.totalorder %s25, 0
      %p88 = por %p86, %p87
      %p89 = scmp.ne.s32.totalorder %s75, %s76
      %p90 = scmp.eq.s32.totalorder %s26, 1
      %p91 = por %p89, %p90
      %p93 = scmp.ne.s32.totalorder %s76, %s92
      %p94 = scmp.eq.s32.totalorder %s26, 0
      %p95 = por %p93, %p94
      %s97 = sadd.s32 %s96, 1
      %p100 = scmp.eq.s32.totalorder %s20, 1
      %p101 = scmp.ne.s32.totalorder %s96, %s98
      %p102 = scmp.eq.s32.totalorder %s20, 0
      %p103 = por %p101, %p102
      %p104 = scmp.ne.s32.totalorder %s96, %s98
      %p105 = scmp.eq.s32.totalorder %s25, 1
      %p106 = por %p104, %p105
      %p107 = scmp.ne.s32.totalorder %s98, %s99
      %p108 = scmp.eq.s32.totalorder %s25, 0
      %p109 = por %p107, %p108
      %p110 = scmp.ne.s32.totalorder %s98, %s99
      %p111 = scmp.eq.s32.totalorder %s26, 1
      %p112 = por %p110, %p111
      %p114 = scmp.ne.s32.totalorder %s99, %s113
      %p115 = scmp.eq.s32.totalorder %s26, 0
      %p116 = por %p114, %p115
      %s118 = sadd.s32 %s117, 1
      %p121 = scmp.eq.s32.totalorder %s20, 1
      %p122 = scmp.ne.s32.totalorder %s117, %s119
      %p123 = scmp.eq.s32.totalorder %s20, 0
      %p124 = por %p122, %p123
      %p125 = scmp.ne.s32.totalorder %s117, %s119
      %p126 = scmp.eq.s32.totalorder %s25, 1
      %p127 = por %p125, %p126
      %p128 = scmp.ne.s32.totalorder %s119, %s120
      %p129 = scmp.eq.s32.totalorder %s25, 0
      %p130 = por %p128, %p129
      %p131 = scmp.ne.s32.totalorder %s119, %s120
      %p132 = scmp.eq.s32.totalorder %s26, 1
      %p133 = por %p131, %p132
      %p135 = scmp.ne.s32.totalorder %s120, %s134
      %p136 = scmp.eq.s32.totalorder %s26, 0
      %p137 = por %p135, %p136
      %s139 = sadd.s32 %s138, 1
      %p142 = scmp.eq.s32.totalorder %s20, 1
      %p143 = scmp.ne.s32.totalorder %s138, %s140
      %p144 = scmp.eq.s32.totalorder %s20, 0
      %p145 = por %p143, %p144
      %p146 = scmp.ne.s32.totalorder %s138, %s140
      %p147 = scmp.eq.s32.totalorder %s25, 1
      %p148 = por %p146, %p147
      %p149 = scmp.ne.s32.totalorder %s140, %s141
      %p150 = scmp.eq.s32.totalorder %s25, 0
      %p151 = por %p149, %p150
      %p152 = scmp.ne.s32.totalorder %s140, %s141
      %p153 = scmp.eq.s32.totalorder %s26, 1
      %p154 = por %p152, %p153
      %p156 = scmp.ne.s32.totalorder %s141, %s155
      %p157 = scmp.eq.s32.totalorder %s26, 0
      %p158 = por %p156, %p157
      %s159 = ssub.s32 %s27, %s39
      %s160 = ssub.s32 %s28, %s35
      %s161 = sor.u32 %s159, %s160
      %p162 = scmp.eq.s32.totalorder %s161, 0
      %s164 = sadd.s32 %s163, 1
      %s165 = scalar_select %p162, %s163, %s164
      %p168 = pneg %p162
      %p169 = scmp.eq.s32.totalorder %s20, 1
      %p170 = por %p168, %p169
      %p171 = scmp.ne.s32.totalorder %s163, %s166
      %p172 = scmp.eq.s32.totalorder %s20, 0
      %p173 = por %p171, %p172
      %p174 = scmp.ne.s32.totalorder %s163, %s166
      %p175 = scmp.eq.s32.totalorder %s25, 1
      %p176 = por %p174, %p175
      %p177 = scmp.ne.s32.totalorder %s166, %s167
      %p178 = scmp.eq.s32.totalorder %s25, 0
      %p179 = por %p177, %p178
      %p180 = scmp.ne.s32.totalorder %s166, %s167
      %p181 = scmp.eq.s32.totalorder %s26, 1
      %p182 = por %p180, %p181
      %p184 = scmp.ne.s32.totalorder %s167, %s183
      %p185 = scmp.eq.s32.totalorder %s26, 0
      %p186 = por %p184, %p185
      %p187 = scmp.le.s32.totalorder 1, %s20
      %p188 = scmp.lt.s32.totalorder %s20, 3
      %p189 = pnand %p187, %p188
      %p190 = pneg %p189
      // Predicated region
      $region9: #{tpu_custom_call.1} parent=5 // pred_check
        _
      $region10: #{tpu_custom_call.1} parent=5 // pred_check_branch
        %192 = sbr.rel (%p189) target = $region12
      $region11: #{tpu_custom_call.1} parent=5 // pred_region
        %s193 = ssub.s32 %s20, 1
        // Predicated region
        $region13: #{tpu_custom_call.1} parent=11 // pred_check
          %p194 = pneg %p109
        $region14: #{tpu_custom_call.1} parent=11 // pred_check_branch
          %196 = sbr.rel (%p194) target = $region16
        $region15: #{tpu_custom_call.1} parent=11 // pred_region
          _
        $region16: #{tpu_custom_call.1} parent=11 // pred_fallthru
          _
        // Predicated region
        $region17: #{tpu_custom_call.1} parent=11 // pred_check
          %p197 = pneg %p130
        $region18: #{tpu_custom_call.1} parent=11 // pred_check_branch
          %199 = sbr.rel (%p197) target = $region20
        $region19: #{tpu_custom_call.1} parent=11 // pred_region
          _
        $region20: #{tpu_custom_call.1} parent=11 // pred_fallthru
          _
        // Predicated region
        $region21: #{tpu_custom_call.1} parent=11 // pred_check
          %p200 = pneg %p151
        $region22: #{tpu_custom_call.1} parent=11 // pred_check_branch
          %202 = sbr.rel (%p200) target = $region24
        $region23: #{tpu_custom_call.1} parent=11 // pred_region
          %s204 = ssub.s32 32768, 32768
          %205 = vsyncadd [#allocation6], %s204
          %s206 = sshll.u32 [#allocation7], 4
          %s207 = int_to_ptr.vmem [resolvable:$true] %s206
          %212 = dma.hbm_to_vmem [thread:$0]  %s4, 32768, %s207, [#allocation6], 1024, 1024, 64
        $region24: #{tpu_custom_call.1} parent=11 // pred_fallthru
          _
      $region12: #{tpu_custom_call.1} parent=5 // pred_fallthru
        _
      %p213 = scmp.lt.s32.totalorder %s20, 2
      // Predicated region
      $region25: #{tpu_custom_call.1} parent=5 // pred_check
        %p214 = pneg %p213
      $region26: #{tpu_custom_call.1} parent=5 // pred_check_branch
        %216 = sbr.rel (%p214) target = $region28
      $region27: #{tpu_custom_call.1} parent=5 // pred_region
        // Predicated region
        $region29: #{tpu_custom_call.1} parent=27 // pred_check
          %p217 = pneg %p54
        $region30: #{tpu_custom_call.1} parent=27 // pred_check_branch
          %219 = sbr.rel (%p217) target = $region32
        $region31: #{tpu_custom_call.1} parent=27 // pred_region
          %s220 = sand.u32 %s44, 1
          %s221 = scalar_lea.sflag [#allocation3], %s220
          %s222 = sand.u32 %s44, 1
          %s223 = smul.addr %s222, 16
          %s224 = scalar_lea.vmem [#allocation2], %s223
          %s225 = smul.u32 2, %s28
          %s227 = ssub.s32 256, 256
          %228 = vsyncadd %s221, %s227
          %s229 = smul.addr %s27, 2
          %s230 = sadd.s32 %s225, %s229
          %s231 = smul.addr %s230, 128
          %s232 = scalar_lea.hbm %s0, %s231
          %s234 = sshll.u32 %s224, 4
          %s235 = int_to_ptr.vmem [resolvable:$true] %s234
          %237 = dma.hbm_to_vmem [thread:$0]  %s232, 256, %s235, %s221
        $region32: #{tpu_custom_call.1} parent=27 // pred_fallthru
          _
        // Predicated region
        $region33: #{tpu_custom_call.1} parent=27 // pred_check
          %p238 = pneg %p82
        $region34: #{tpu_custom_call.1} parent=27 // pred_check_branch
          %240 = sbr.rel (%p238) target = $region36
        $region35: #{tpu_custom_call.1} parent=27 // pred_region
          %s241 = sand.u32 %s20, 1
          %s242 = scalar_lea.sflag [#allocation6], %s241
          %s243 = sand.u32 %s72, 1
          %s244 = smul.addr %s243, 32
          %s245 = scalar_lea.vmem [#allocation5], %s244
          %s246 = smul.u32 8, %s28
          %s248 = ssub.s32 512, 512
          %249 = vsyncadd %s242, %s248
          %s250 = smul.addr %s27, 8
          %s251 = sadd.s32 %s246, %s250
          %s252 = smul.addr %s251, 64
          %s253 = scalar_lea.hbm %s1, %s252
          %s255 = sshll.u32 %s245, 4
          %s256 = int_to_ptr.vmem [resolvable:$true] %s255
          %258 = dma.hbm_to_vmem [thread:$0]  %s253, 512, %s256, %s242
        $region36: #{tpu_custom_call.1} parent=27 // pred_fallthru
          _
      $region28: #{tpu_custom_call.1} parent=5 // pred_fallthru
        _
      %p259 = scmp.le.s32.totalorder 1, %s20
      %p260 = scmp.lt.s32.totalorder %s20, 3
      %p261 = pnand %p259, %p260
      %p262 = pneg %p261
      // Predicated region
      $region37: #{tpu_custom_call.1} parent=5 // pred_check
        _
      $region38: #{tpu_custom_call.1} parent=5 // pred_check_branch
        %264 = sbr.rel (%p261) target = $region40
      $region39: #{tpu_custom_call.1} parent=5 // pred_region
        %s265 = ssub.s32 %s20, 1
        %s266 = sand.u32 %s47, 1
        %s267 = scalar_lea.sflag [#allocation3], %s266
        %s268 = sand.u32 %s47, 1
        %s269 = smul.addr %s268, 16
        %s270 = scalar_lea.vmem [#allocation2], %s269
        // Predicated region
        $region41: #{tpu_custom_call.1} parent=39 // pred_check
          %p271 = pneg %p60
        $region42: #{tpu_custom_call.1} parent=39 // pred_check_branch
          %273 = sbr.rel (%p271) target = $region44
        $region43: #{tpu_custom_call.1} parent=39 // pred_region
          %274 = dma.done %s267, 256
        $region44: #{tpu_custom_call.1} parent=39 // pred_fallthru
          _
        %s275 = sand.u32 %s25, 1
        %s276 = scalar_lea.sflag [#allocation6], %s275
        %s277 = sand.u32 %s75, 1
        %s278 = smul.addr %s277, 32
        %s279 = scalar_lea.vmem [#allocation5], %s278
        // Predicated region
        $region45: #{tpu_custom_call.1} parent=39 // pred_check
          %p280 = pneg %p88
        $region46: #{tpu_custom_call.1} parent=39 // pred_check_branch
          %282 = sbr.rel (%p280) target = $region48
        $region47: #{tpu_custom_call.1} parent=39 // pred_region
          %283 = dma.done %s276, 512
        $region48: #{tpu_custom_call.1} parent=39 // pred_fallthru
          _
        // Predicated region
        $region49: #{tpu_custom_call.1} parent=39 // pred_check
          %p284 = pneg %p151
        $region50: #{tpu_custom_call.1} parent=39 // pred_check_branch
          %286 = sbr.rel (%p284) target = $region52
        $region51: #{tpu_custom_call.1} parent=39 // pred_region
          %287 = dma.done [#allocation6], 32768
        $region52: #{tpu_custom_call.1} parent=39 // pred_fallthru
          _
        %s288 = sand.u32 %s47, 1
        %s289 = scalar_lea.sflag [#allocation3], %s288
        %s290 = sand.u32 %s47, 1
        %s291 = smul.addr %s290, 16
        %s292 = scalar_lea.vmem [#allocation2], %s291
        %p293 = pneg %p60
        %p294 = pneg %p57
        %s295 = sand.u32 %s25, 1
        %s296 = scalar_lea.sflag [#allocation6], %s295
        %s297 = sand.u32 %s75, 1
        %s298 = smul.addr %s297, 32
        %s299 = scalar_lea.vmem [#allocation5], %s298
        %p300 = pneg %p88
        %p301 = pneg %p85
        %p302 = pneg %p109
        %p303 = pneg %p106
        %p304 = pneg %p130
        %p305 = pneg %p127
        %p306 = pneg %p151
        %p307 = pneg %p148
        %p308 = pneg %p179
        %p309 = pneg %p176
        %s310 = sand.u32 %s166, 1
        %s311 = scalar_lea.sflag [#allocation4], %s310
        %s312 = sand.u32 %s166, 1
        %s313 = smul.addr %s312, 64
        %s314 = scalar_lea.vmem [#allocation8], %s313
        %s315 = smul.u32 2, %s30
        %s316 = smul.u32 8, %s30
        %s317 = smul.u32 8, %s30
        %v318 = vld [vmem:[%s270] sm:$0xff]
        %v319 = vld [vmem:[%s270 + $0x8] sm:$0xff]
        %v320 = vld [vmem:[%s2] sm:$0xff]
        %v321 = vld [vmem:[%s279] sm:$0xff]
        %v322 = vld [vmem:[%s279 + $0x8] sm:$0xff]
        %v323 = vld [vmem:[%s279 + $0x10] sm:$0xff]
        %v324 = vld [vmem:[%s279 + $0x18] sm:$0xff]
        %v329 = vcombine.high %v321, %v321
        %v330 = vcombine.high %v322, %v322
        %v331 = vcombine.high %v323, %v323
        %v332 = vcombine.high %v324, %v324
        %vm333 = vcmask 31744
        %v335 = vsel %vm333, %v320, 0
        %vm337 = vcmask 1043456
        %v338 = vsel %vm337, %v321, 0
        %v340 = vsel %vm337, %v329, 0
        %v342 = vsel %vm337, %v322, 0
        %v344 = vsel %vm337, %v330, 0
        %v346 = vsel %vm337, %v323, 0
        %v348 = vsel %vm337, %v331, 0
        %v350 = vsel %vm337, %v324, 0
        %v352 = vsel %vm337, %v332, 0
        %354 = vmatprep.subr.mxu0 %v340
        %355 = vmatpush1.msra.mxu0 %v338
        %356 = vmatprep.subr.mxu0 0.0
        %357 = vmatpush1.msra.mxu0 0.0
        %358 = vmatprep.subr.mxu0 0.0
        %359 = vmatpush1.msra.mxu0 0.0
        %360 = vmatprep.subr.mxu0 0.0
        %361 = vmatpush1.msra.mxu0 0.0
        %362 = vmatprep.subr.mxu0 0.0
        %363 = vmatpush1.msra.mxu0 0.0
        %364 = vmatprep.subr.mxu0 0.0
        %365 = vmatpush1.msra.mxu0 0.0
        %366 = vmatprep.subr.mxu0 0.0
        %367 = vmatpush1.msra.mxu0 0.0
        %368 = vmatprep.subr.mxu0 0.0
        %369 = vmatpush1.msra.mxu0 0.0
        %370 = vmatprep.subr.mxu0 0.0
        %371 = vmatpush1.msra.mxu0 0.0
        %372 = vmatprep.subr.mxu0 0.0
        %373 = vmatpush1.msra.mxu0 0.0
        %374 = vmatprep.subr.mxu0 0.0
        %375 = vmatpush1.msra.mxu0 0.0
        %376 = vmatprep.subr.mxu0 0.0
        %377 = vmatpush1.msra.mxu0 0.0
        %378 = vmatprep.subr.mxu0 0.0
        %379 = vmatpush1.msra.mxu0 0.0
        %380 = vmatprep.subr.mxu0 0.0
        %381 = vmatpush1.msra.mxu0 0.0
        %382 = vmatprep.subr.mxu0 0.0
        %383 = vmatpush1.msra.mxu0 0.0
        %384 = vmatprep.subr.mxu0 0.0
        %385 = vmatpush1.msra.mxu0 0.0
        %386 = vmatprep.subr.mxu0 0.0
        %387 = vmatpush1.msra.mxu0 0.0
        %388 = vmatprep.subr.mxu0 0.0
        %389 = vmatpush1.msra.mxu0 0.0
        %390 = vmatprep.subr.mxu0 0.0
        %391 = vmatpush1.msra.mxu0 0.0
        %392 = vmatprep.subr.mxu0 0.0
        %393 = vmatpush1.msra.mxu0 0.0
        %394 = vmatprep.subr.mxu0 0.0
        %395 = vmatpush1.msra.mxu0 0.0
        %396 = vmatprep.subr.mxu0 0.0
        %397 = vmatpush1.msra.mxu0 0.0
        %398 = vmatprep.subr.mxu0 0.0
        %399 = vmatpush1.msra.mxu0 0.0
        %400 = vmatprep.subr.mxu0 0.0
        %401 = vmatpush1.msra.mxu0 0.0
        %402 = vmatprep.subr.mxu0 0.0
        %403 = vmatpush1.msra.mxu0 0.0
        %404 = vmatprep.subr.mxu0 0.0
        %405 = vmatpush1.msra.mxu0 0.0
        %406 = vmatprep.subr.mxu0 0.0
        %407 = vmatpush1.msra.mxu0 0.0
        %408 = vmatprep.subr.mxu0 0.0
        %409 = vmatpush1.msra.mxu0 0.0
        %410 = vmatprep.subr.mxu0 0.0
        %411 = vmatpush1.msra.mxu0 0.0
        %412 = vmatprep.subr.mxu0 0.0
        %413 = vmatpush1.msra.mxu0 0.0
        %414 = vmatprep.subr.mxu0 0.0
        %415 = vmatpush1.msra.mxu0 0.0
        %416 = vmatprep.subr.mxu0 0.0
        %417 = vmatpush1.msra.mxu0 0.0
        %418 = vmatprep.mubr.f32.mxu0 0.0
        %419 = vmatmul.mubr.f32.gmra.mrb[0].mxu0 %v335
        %v420 = vpop.f32.mrb[0].mxu0
        %v421 = vadd.f32 0.0, %v420
        %v422 = vpop.f32.mrb[0].mxu0
        %v423 = vadd.f32 0.0, %v422
        %424 = vdwg.mxu0
        %425 = vmatprep.subr.mxu0 %v344
        %426 = vmatpush1.msra.mxu0 %v342
        %427 = vmatprep.subr.mxu0 0.0
        %428 = vmatpush1.msra.mxu0 0.0
        %429 = vmatprep.subr.mxu0 0.0
        %430 = vmatpush1.msra.mxu0 0.0
        %431 = vmatprep.subr.mxu0 0.0
        %432 = vmatpush1.msra.mxu0 0.0
        %433 = vmatprep.subr.mxu0 0.0
        %434 = vmatpush1.msra.mxu0 0.0
        %435 = vmatprep.subr.mxu0 0.0
        %436 = vmatpush1.msra.mxu0 0.0
        %437 = vmatprep.subr.mxu0 0.0
        %438 = vmatpush1.msra.mxu0 0.0
        %439 = vmatprep.subr.mxu0 0.0
        %440 = vmatpush1.msra.mxu0 0.0
        %441 = vmatprep.subr.mxu0 0.0
        %442 = vmatpush1.msra.mxu0 0.0
        %443 = vmatprep.subr.mxu0 0.0
        %444 = vmatpush1.msra.mxu0 0.0
        %445 = vmatprep.subr.mxu0 0.0
        %446 = vmatpush1.msra.mxu0 0.0
        %447 = vmatprep.subr.mxu0 0.0
        %448 = vmatpush1.msra.mxu0 0.0
        %449 = vmatprep.subr.mxu0 0.0
        %450 = vmatpush1.msra.mxu0 0.0
        %451 = vmatprep.subr.mxu0 0.0
        %452 = vmatpush1.msra.mxu0 0.0
        %453 = vmatprep.subr.mxu0 0.0
        %454 = vmatpush1.msra.mxu0 0.0
        %455 = vmatprep.subr.mxu0 0.0
        %456 = vmatpush1.msra.mxu0 0.0
        %457 = vmatprep.subr.mxu0 0.0
        %458 = vmatpush1.msra.mxu0 0.0
        %459 = vmatprep.subr.mxu0 0.0
        %460 = vmatpush1.msra.mxu0 0.0
        %461 = vmatprep.subr.mxu0 0.0
        %462 = vmatpush1.msra.mxu0 0.0
        %463 = vmatprep.subr.mxu0 0.0
        %464 = vmatpush1.msra.mxu0 0.0
        %465 = vmatprep.subr.mxu0 0.0
        %466 = vmatpush1.msra.mxu0 0.0
        %467 = vmatprep.subr.mxu0 0.0
        %468 = vmatpush1.msra.mxu0 0.0
        %469 = vmatprep.subr.mxu0 0.0
        %470 = vmatpush1.msra.mxu0 0.0
        %471 = vmatprep.subr.mxu0 0.0
        %472 = vmatpush1.msra.mxu0 0.0
        %473 = vmatprep.subr.mxu0 0.0
        %474 = vmatpush1.msra.mxu0 0.0
        %475 = vmatprep.subr.mxu0 0.0
        %476 = vmatpush1.msra.mxu0 0.0
        %477 = vmatprep.subr.mxu0 0.0
        %478 = vmatpush1.msra.mxu0 0.0
        %479 = vmatprep.subr.mxu0 0.0
        %480 = vmatpush1.msra.mxu0 0.0
        %481 = vmatprep.subr.mxu0 0.0
        %482 = vmatpush1.msra.mxu0 0.0
        %483 = vmatprep.subr.mxu0 0.0
        %484 = vmatpush1.msra.mxu0 0.0
        %485 = vmatprep.subr.mxu0 0.0
        %486 = vmatpush1.msra.mxu0 0.0
        %487 = vmatprep.subr.mxu0 0.0
        %488 = vmatpush1.msra.mxu0 0.0
        %489 = vmatprep.mubr.f32.mxu0 0.0
        %490 = vmatmul.mubr.f32.gmra.mrb[0].mxu0 %v335
        %v491 = vpop.f32.mrb[0].mxu0
        %v492 = vadd.f32 0.0, %v491
        %v493 = vpop.f32.mrb[0].mxu0
        %v494 = vadd.f32 0.0, %v493
        %495 = vdwg.mxu0
        %496 = vmatprep.subr.mxu0 %v348
        %497 = vmatpush1.msra.mxu0 %v346
        %498 = vmatprep.subr.mxu0 0.0
        %499 = vmatpush1.msra.mxu0 0.0
        %500 = vmatprep.subr.mxu0 0.0
        %501 = vmatpush1.msra.mxu0 0.0
        %502 = vmatprep.subr.mxu0 0.0
        %503 = vmatpush1.msra.mxu0 0.0
        %504 = vmatprep.subr.mxu0 0.0
        %505 = vmatpush1.msra.mxu0 0.0
        %506 = vmatprep.subr.mxu0 0.0
        %507 = vmatpush1.msra.mxu0 0.0
        %508 = vmatprep.subr.mxu0 0.0
        %509 = vmatpush1.msra.mxu0 0.0
        %510 = vmatprep.subr.mxu0 0.0
        %511 = vmatpush1.msra.mxu0 0.0
        %512 = vmatprep.subr.mxu0 0.0
        %513 = vmatpush1.msra.mxu0 0.0
        %514 = vmatprep.subr.mxu0 0.0
        %515 = vmatpush1.msra.mxu0 0.0
        %516 = vmatprep.subr.mxu0 0.0
        %517 = vmatpush1.msra.mxu0 0.0
        %518 = vmatprep.subr.mxu0 0.0
        %519 = vmatpush1.msra.mxu0 0.0
        %520 = vmatprep.subr.mxu0 0.0
        %521 = vmatpush1.msra.mxu0 0.0
        %522 = vmatprep.subr.mxu0 0.0
        %523 = vmatpush1.msra.mxu0 0.0
        %524 = vmatprep.subr.mxu0 0.0
        %525 = vmatpush1.msra.mxu0 0.0
        %526 = vmatprep.subr.mxu0 0.0
        %527 = vmatpush1.msra.mxu0 0.0
        %528 = vmatprep.subr.mxu0 0.0
        %529 = vmatpush1.msra.mxu0 0.0
        %530 = vmatprep.subr.mxu0 0.0
        %531 = vmatpush1.msra.mxu0 0.0
        %532 = vmatprep.subr.mxu0 0.0
        %533 = vmatpush1.msra.mxu0 0.0
        %534 = vmatprep.subr.mxu0 0.0
        %535 = vmatpush1.msra.mxu0 0.0
        %536 = vmatprep.subr.mxu0 0.0
        %537 = vmatpush1.msra.mxu0 0.0
        %538 = vmatprep.subr.mxu0 0.0
        %539 = vmatpush1.msra.mxu0 0.0
        %540 = vmatprep.subr.mxu0 0.0
        %541 = vmatpush1.msra.mxu0 0.0
        %542 = vmatprep.subr.mxu0 0.0
        %543 = vmatpush1.msra.mxu0 0.0
        %544 = vmatprep.subr.mxu0 0.0
        %545 = vmatpush1.msra.mxu0 0.0
        %546 = vmatprep.subr.mxu0 0.0
        %547 = vmatpush1.msra.mxu0 0.0
        %548 = vmatprep.subr.mxu0 0.0
        %549 = vmatpush1.msra.mxu0 0.0
        %550 = vmatprep.subr.mxu0 0.0
        %551 = vmatpush1.msra.mxu0 0.0
        %552 = vmatprep.subr.mxu0 0.0
        %553 = vmatpush1.msra.mxu0 0.0
        %554 = vmatprep.subr.mxu0 0.0
        %555 = vmatpush1.msra.mxu0 0.0
        %556 = vmatprep.subr.mxu0 0.0
        %557 = vmatpush1.msra.mxu0 0.0
        %558 = vmatprep.subr.mxu0 0.0
        %559 = vmatpush1.msra.mxu0 0.0
        %560 = vmatprep.mubr.f32.mxu0 0.0
        %561 = vmatmul.mubr.f32.gmra.mrb[0].mxu0 %v335
        %v562 = vpop.f32.mrb[0].mxu0
        %v563 = vadd.f32 0.0, %v562
        %v564 = vpop.f32.mrb[0].mxu0
        %v565 = vadd.f32 0.0, %v564
        %566 = vdwg.mxu0
        %567 = vmatprep.subr.mxu0 %v352
        %568 = vmatpush1.msra.mxu0 %v350
        %569 = vmatprep.subr.mxu0 0.0
        %570 = vmatpush1.msra.mxu0 0.0
        %571 = vmatprep.subr.mxu0 0.0
        %572 = vmatpush1.msra.mxu0 0.0
        %573 = vmatprep.subr.mxu0 0.0
        %574 = vmatpush1.msra.mxu0 0.0
        %575 = vmatprep.subr.mxu0 0.0
        %576 = vmatpush1.msra.mxu0 0.0
        %577 = vmatprep.subr.mxu0 0.0
        %578 = vmatpush1.msra.mxu0 0.0
        %579 = vmatprep.subr.mxu0 0.0
        %580 = vmatpush1.msra.mxu0 0.0
        %581 = vmatprep.subr.mxu0 0.0
        %582 = vmatpush1.msra.mxu0 0.0
        %583 = vmatprep.subr.mxu0 0.0
        %584 = vmatpush1.msra.mxu0 0.0
        %585 = vmatprep.subr.mxu0 0.0
        %586 = vmatpush1.msra.mxu0 0.0
        %587 = vmatprep.subr.mxu0 0.0
        %588 = vmatpush1.msra.mxu0 0.0
        %589 = vmatprep.subr.mxu0 0.0
        %590 = vmatpush1.msra.mxu0 0.0
        %591 = vmatprep.subr.mxu0 0.0
        %592 = vmatpush1.msra.mxu0 0.0
        %593 = vmatprep.subr.mxu0 0.0
        %594 = vmatpush1.msra.mxu0 0.0
        %595 = vmatprep.subr.mxu0 0.0
        %596 = vmatpush1.msra.mxu0 0.0
        %597 = vmatprep.subr.mxu0 0.0
        %598 = vmatpush1.msra.mxu0 0.0
        %599 = vmatprep.subr.mxu0 0.0
        %600 = vmatpush1.msra.mxu0 0.0
        %601 = vmatprep.subr.mxu0 0.0
        %602 = vmatpush1.msra.mxu0 0.0
        %603 = vmatprep.subr.mxu0 0.0
        %604 = vmatpush1.msra.mxu0 0.0
        %605 = vmatprep.subr.mxu0 0.0
        %606 = vmatpush1.msra.mxu0 0.0
        %607 = vmatprep.subr.mxu0 0.0
        %608 = vmatpush1.msra.mxu0 0.0
        %609 = vmatprep.subr.mxu0 0.0
        %610 = vmatpush1.msra.mxu0 0.0
        %611 = vmatprep.subr.mxu0 0.0
        %612 = vmatpush1.msra.mxu0 0.0
        %613 = vmatprep.subr.mxu0 0.0
        %614 = vmatpush1.msra.mxu0 0.0
        %615 = vmatprep.subr.mxu0 0.0
        %616 = vmatpush1.msra.mxu0 0.0
        %617 = vmatprep.subr.mxu0 0.0
        %618 = vmatpush1.msra.mxu0 0.0
        %619 = vmatprep.subr.mxu0 0.0
        %620 = vmatpush1.msra.mxu0 0.0
        %621 = vmatprep.subr.mxu0 0.0
        %622 = vmatpush1.msra.mxu0 0.0
        %623 = vmatprep.subr.mxu0 0.0
        %624 = vmatpush1.msra.mxu0 0.0
        %625 = vmatprep.subr.mxu0 0.0
        %626 = vmatpush1.msra.mxu0 0.0
        %627 = vmatprep.subr.mxu0 0.0
        %628 = vmatpush1.msra.mxu0 0.0
        %629 = vmatprep.subr.mxu0 0.0
        %630 = vmatpush1.msra.mxu0 0.0
        %631 = vmatprep.mubr.f32.mxu0 0.0
        %632 = vmatmul.mubr.f32.gmra.mrb[0].mxu0 %v335
        %v633 = vpop.f32.mrb[0].mxu0
        %v634 = vadd.f32 0.0, %v633
        %v635 = vpop.f32.mrb[0].mxu0
        %v636 = vadd.f32 0.0, %v635
        %637 = vdwg.mxu0
        %v638 = vld [vmem:[#allocation7] sm:$0xff]
        %v639 = vld [vmem:[#allocation7 + $0x8] sm:$0xff]
        %v640 = vld [vmem:[#allocation7 + $0x10] sm:$0xff]
        %v641 = vld [vmem:[#allocation7 + $0x18] sm:$0xff]
        %v642 = vld [vmem:[#allocation7 + $0x20] sm:$0xff]
        %v643 = vld [vmem:[#allocation7 + $0x28] sm:$0xff]
        %v644 = vld [vmem:[#allocation7 + $0x30] sm:$0xff]
        %v645 = vld [vmem:[#allocation7 + $0x38] sm:$0xff]
        %v646 = vld [vmem:[#allocation7 + $0x40] sm:$0xff]
        %v647 = vld [vmem:[#allocation7 + $0x48] sm:$0xff]
        %v648 = vld [vmem:[#allocation7 + $0x50] sm:$0xff]
        %v649 = vld [vmem:[#allocation7 + $0x58] sm:$0xff]
        %v650 = vld [vmem:[#allocation7 + $0x60] sm:$0xff]
        %v651 = vld [vmem:[#allocation7 + $0x68] sm:$0xff]
        %v652 = vld [vmem:[#allocation7 + $0x70] sm:$0xff]
        %v653 = vld [vmem:[#allocation7 + $0x78] sm:$0xff]
        %v654 = vld [vmem:[#allocation7 + $0x80] sm:$0xff]
        %v655 = vld [vmem:[#allocation7 + $0x88] sm:$0xff]
        %v656 = vld [vmem:[#allocation7 + $0x90] sm:$0xff]
        %v657 = vld [vmem:[#allocation7 + $0x98] sm:$0xff]
        %v658 = vld [vmem:[#allocation7 + $0xa0] sm:$0xff]
        %v659 = vld [vmem:[#allocation7 + $0xa8] sm:$0xff]
        %v660 = vld [vmem:[#allocation7 + $0xb0] sm:$0xff]
        %v661 = vld [vmem:[#allocation7 + $0xb8] sm:$0xff]
        %v662 = vld [vmem:[#allocation7 + $0xc0] sm:$0xff]
        %v663 = vld [vmem:[#allocation7 + $0xc8] sm:$0xff]
        %v664 = vld [vmem:[#allocation7 + $0xd0] sm:$0xff]
        %v665 = vld [vmem:[#allocation7 + $0xd8] sm:$0xff]
        %v666 = vld [vmem:[#allocation7 + $0xe0] sm:$0xff]
        %v667 = vld [vmem:[#allocation7 + $0xe8] sm:$0xff]
        %v668 = vld [vmem:[#allocation7 + $0xf0] sm:$0xff]
        %v669 = vld [vmem:[#allocation7 + $0xf8] sm:$0xff]
        %v670 = vld [vmem:[#allocation7 + $0x100] sm:$0xff]
        %v671 = vld [vmem:[#allocation7 + $0x108] sm:$0xff]
        %v672 = vld [vmem:[#allocation7 + $0x110] sm:$0xff]
        %v673 = vld [vmem:[#allocation7 + $0x118] sm:$0xff]
        %v674 = vld [vmem:[#allocation7 + $0x120] sm:$0xff]
        %v675 = vld [vmem:[#allocation7 + $0x128] sm:$0xff]
        %v676 = vld [vmem:[#allocation7 + $0x130] sm:$0xff]
        %v677 = vld [vmem:[#allocation7 + $0x138] sm:$0xff]
        %v678 = vld [vmem:[#allocation7 + $0x140] sm:$0xff]
        %v679 = vld [vmem:[#allocation7 + $0x148] sm:$0xff]
        %v680 = vld [vmem:[#allocation7 + $0x150] sm:$0xff]
        %v681 = vld [vmem:[#allocation7 + $0x158] sm:$0xff]
        %v682 = vld [vmem:[#allocation7 + $0x160] sm:$0xff]
        %v683 = vld [vmem:[#allocation7 + $0x168] sm:$0xff]
        %v684 = vld [vmem:[#allocation7 + $0x170] sm:$0xff]
        %v685 = vld [vmem:[#allocation7 + $0x178] sm:$0xff]
        %v686 = vld [vmem:[#allocation7 + $0x180] sm:$0xff]
        %v687 = vld [vmem:[#allocation7 + $0x188] sm:$0xff]
        %v688 = vld [vmem:[#allocation7 + $0x190] sm:$0xff]
        %v689 = vld [vmem:[#allocation7 + $0x198] sm:$0xff]
        %v690 = vld [vmem:[#allocation7 + $0x1a0] sm:$0xff]
        %v691 = vld [vmem:[#allocation7 + $0x1a8] sm:$0xff]
        %v692 = vld [vmem:[#allocation7 + $0x1b0] sm:$0xff]
        %v693 = vld [vmem:[#allocation7 + $0x1b8] sm:$0xff]
        %v694 = vld [vmem:[#allocation7 + $0x1c0] sm:$0xff]
        %v695 = vld [vmem:[#allocation7 + $0x1c8] sm:$0xff]
        %v696 = vld [vmem:[#allocation7 + $0x1d0] sm:$0xff]
        %v697 = vld [vmem:[#allocation7 + $0x1d8] sm:$0xff]
        %v698 = vld [vmem:[#allocation7 + $0x1e0] sm:$0xff]
        %v699 = vld [vmem:[#allocation7 + $0x1e8] sm:$0xff]
        %v700 = vld [vmem:[#allocation7 + $0x1f0] sm:$0xff]
        %v701 = vld [vmem:[#allocation7 + $0x1f8] sm:$0xff]
        %v702 = vld [vmem:[#allocation7 + $0x200] sm:$0xff]
        %v703 = vld [vmem:[#allocation7 + $0x208] sm:$0xff]
        %v704 = vld [vmem:[#allocation7 + $0x210] sm:$0xff]
        %v705 = vld [vmem:[#allocation7 + $0x218] sm:$0xff]
        %v706 = vld [vmem:[#allocation7 + $0x220] sm:$0xff]
        %v707 = vld [vmem:[#allocation7 + $0x228] sm:$0xff]
        %v708 = vld [vmem:[#allocation7 + $0x230] sm:$0xff]
        %v709 = vld [vmem:[#allocation7 + $0x238] sm:$0xff]
        %v710 = vld [vmem:[#allocation7 + $0x240] sm:$0xff]
        %v711 = vld [vmem:[#allocation7 + $0x248] sm:$0xff]
        %v712 = vld [vmem:[#allocation7 + $0x250] sm:$0xff]
        %v713 = vld [vmem:[#allocation7 + $0x258] sm:$0xff]
        %v714 = vld [vmem:[#allocation7 + $0x260] sm:$0xff]
        %v715 = vld [vmem:[#allocation7 + $0x268] sm:$0xff]
        %v716 = vld [vmem:[#allocation7 + $0x270] sm:$0xff]
        %v717 = vld [vmem:[#allocation7 + $0x278] sm:$0xff]
        %v718 = vld [vmem:[#allocation7 + $0x280] sm:$0xff]
        %v719 = vld [vmem:[#allocation7 + $0x288] sm:$0xff]
        %v720 = vld [vmem:[#allocation7 + $0x290] sm:$0xff]
        %v721 = vld [vmem:[#allocation7 + $0x298] sm:$0xff]
        %v722 = vld [vmem:[#allocation7 + $0x2a0] sm:$0xff]
        %v723 = vld [vmem:[#allocation7 + $0x2a8] sm:$0xff]
        %v724 = vld [vmem:[#allocation7 + $0x2b0] sm:$0xff]
        %v725 = vld [vmem:[#allocation7 + $0x2b8] sm:$0xff]
        %v726 = vld [vmem:[#allocation7 + $0x2c0] sm:$0xff]
        %v727 = vld [vmem:[#allocation7 + $0x2c8] sm:$0xff]
        %v728 = vld [vmem:[#allocation7 + $0x2d0] sm:$0xff]
        %v729 = vld [vmem:[#allocation7 + $0x2d8] sm:$0xff]
        %v730 = vld [vmem:[#allocation7 + $0x2e0] sm:$0xff]
        %v731 = vld [vmem:[#allocation7 + $0x2e8] sm:$0xff]
        %v732 = vld [vmem:[#allocation7 + $0x2f0] sm:$0xff]
        %v733 = vld [vmem:[#allocation7 + $0x2f8] sm:$0xff]
        %v734 = vld [vmem:[#allocation7 + $0x300] sm:$0xff]
        %v735 = vld [vmem:[#allocation7 + $0x308] sm:$0xff]
        %v736 = vld [vmem:[#allocation7 + $0x310] sm:$0xff]
        %v737 = vld [vmem:[#allocation7 + $0x318] sm:$0xff]
        %v738 = vld [vmem:[#allocation7 + $0x320] sm:$0xff]
        %v739 = vld [vmem:[#allocation7 + $0x328] sm:$0xff]
        %v740 = vld [vmem:[#allocation7 + $0x330] sm:$0xff]
        %v741 = vld [vmem:[#allocation7 + $0x338] sm:$0xff]
        %v742 = vld [vmem:[#allocation7 + $0x340] sm:$0xff]
        %v743 = vld [vmem:[#allocation7 + $0x348] sm:$0xff]
        %v744 = vld [vmem:[#allocation7 + $0x350] sm:$0xff]
        %v745 = vld [vmem:[#allocation7 + $0x358] sm:$0xff]
        %v746 = vld [vmem:[#allocation7 + $0x360] sm:$0xff]
        %v747 = vld [vmem:[#allocation7 + $0x368] sm:$0xff]
        %v748 = vld [vmem:[#allocation7 + $0x370] sm:$0xff]
        %v749 = vld [vmem:[#allocation7 + $0x378] sm:$0xff]
        %v750 = vld [vmem:[#allocation7 + $0x380] sm:$0xff]
        %v751 = vld [vmem:[#allocation7 + $0x388] sm:$0xff]
        %v752 = vld [vmem:[#allocation7 + $0x390] sm:$0xff]
        %v753 = vld [vmem:[#allocation7 + $0x398] sm:$0xff]
        %v754 = vld [vmem:[#allocation7 + $0x3a0] sm:$0xff]
        %v755 = vld [vmem:[#allocation7 + $0x3a8] sm:$0xff]
        %v756 = vld [vmem:[#allocation7 + $0x3b0] sm:$0xff]
        %v757 = vld [vmem:[#allocation7 + $0x3b8] sm:$0xff]
        %v758 = vld [vmem:[#allocation7 + $0x3c0] sm:$0xff]
        %v759 = vld [vmem:[#allocation7 + $0x3c8] sm:$0xff]
        %v760 = vld [vmem:[#allocation7 + $0x3d0] sm:$0xff]
        %v761 = vld [vmem:[#allocation7 + $0x3d8] sm:$0xff]
        %v762 = vld [vmem:[#allocation7 + $0x3e0] sm:$0xff]
        %v763 = vld [vmem:[#allocation7 + $0x3e8] sm:$0xff]
        %v764 = vld [vmem:[#allocation7 + $0x3f0] sm:$0xff]
        %v765 = vld [vmem:[#allocation7 + $0x3f8] sm:$0xff]
        %v766 = vld [vmem:[#allocation7 + $0x400] sm:$0xff]
        %v767 = vld [vmem:[#allocation7 + $0x408] sm:$0xff]
        %v768 = vld [vmem:[#allocation7 + $0x410] sm:$0xff]
        %v769 = vld [vmem:[#allocation7 + $0x418] sm:$0xff]
        %v770 = vld [vmem:[#allocation7 + $0x420] sm:$0xff]
        %v771 = vld [vmem:[#allocation7 + $0x428] sm:$0xff]
        %v772 = vld [vmem:[#allocation7 + $0x430] sm:$0xff]
        %v773 = vld [vmem:[#allocation7 + $0x438] sm:$0xff]
        %v774 = vld [vmem:[#allocation7 + $0x440] sm:$0xff]
        %v775 = vld [vmem:[#allocation7 + $0x448] sm:$0xff]
        %v776 = vld [vmem:[#allocation7 + $0x450] sm:$0xff]
        %v777 = vld [vmem:[#allocation7 + $0x458] sm:$0xff]
        %v778 = vld [vmem:[#allocation7 + $0x460] sm:$0xff]
        %v779 = vld [vmem:[#allocation7 + $0x468] sm:$0xff]
        %v780 = vld [vmem:[#allocation7 + $0x470] sm:$0xff]
        %v781 = vld [vmem:[#allocation7 + $0x478] sm:$0xff]
        %v782 = vld [vmem:[#allocation7 + $0x480] sm:$0xff]
        %v783 = vld [vmem:[#allocation7 + $0x488] sm:$0xff]
        %v784 = vld [vmem:[#allocation7 + $0x490] sm:$0xff]
        %v785 = vld [vmem:[#allocation7 + $0x498] sm:$0xff]
        %v786 = vld [vmem:[#allocation7 + $0x4a0] sm:$0xff]
        %v787 = vld [vmem:[#allocation7 + $0x4a8] sm:$0xff]
        %v788 = vld [vmem:[#allocation7 + $0x4b0] sm:$0xff]
        %v789 = vld [vmem:[#allocation7 + $0x4b8] sm:$0xff]
        %v790 = vld [vmem:[#allocation7 + $0x4c0] sm:$0xff]
        %v791 = vld [vmem:[#allocation7 + $0x4c8] sm:$0xff]
        %v792 = vld [vmem:[#allocation7 + $0x4d0] sm:$0xff]
        %v793 = vld [vmem:[#allocation7 + $0x4d8] sm:$0xff]
        %v794 = vld [vmem:[#allocation7 + $0x4e0] sm:$0xff]
        %v795 = vld [vmem:[#allocation7 + $0x4e8] sm:$0xff]
        %v796 = vld [vmem:[#allocation7 + $0x4f0] sm:$0xff]
        %v797 = vld [vmem:[#allocation7 + $0x4f8] sm:$0xff]
        %v798 = vld [vmem:[#allocation7 + $0x500] sm:$0xff]
        %v799 = vld [vmem:[#allocation7 + $0x508] sm:$0xff]
        %v800 = vld [vmem:[#allocation7 + $0x510] sm:$0xff]
        %v801 = vld [vmem:[#allocation7 + $0x518] sm:$0xff]
        %v802 = vld [vmem:[#allocation7 + $0x520] sm:$0xff]
        %v803 = vld [vmem:[#allocation7 + $0x528] sm:$0xff]
        %v804 = vld [vmem:[#allocation7 + $0x530] sm:$0xff]
        %v805 = vld [vmem:[#allocation7 + $0x538] sm:$0xff]
        %v806 = vld [vmem:[#allocation7 + $0x540] sm:$0xff]
        %v807 = vld [vmem:[#allocation7 + $0x548] sm:$0xff]
        %v808 = vld [vmem:[#allocation7 + $0x550] sm:$0xff]
        %v809 = vld [vmem:[#allocation7 + $0x558] sm:$0xff]
        %v810 = vld [vmem:[#allocation7 + $0x560] sm:$0xff]
        %v811 = vld [vmem:[#allocation7 + $0x568] sm:$0xff]
        %v812 = vld [vmem:[#allocation7 + $0x570] sm:$0xff]
        %v813 = vld [vmem:[#allocation7 + $0x578] sm:$0xff]
        %v814 = vld [vmem:[#allocation7 + $0x580] sm:$0xff]
        %v815 = vld [vmem:[#allocation7 + $0x588] sm:$0xff]
        %v816 = vld [vmem:[#allocation7 + $0x590] sm:$0xff]
        %v817 = vld [vmem:[#allocation7 + $0x598] sm:$0xff]
        %v818 = vld [vmem:[#allocation7 + $0x5a0] sm:$0xff]
        %v819 = vld [vmem:[#allocation7 + $0x5a8] sm:$0xff]
        %v820 = vld [vmem:[#allocation7 + $0x5b0] sm:$0xff]
        %v821 = vld [vmem:[#allocation7 + $0x5b8] sm:$0xff]
        %v822 = vld [vmem:[#allocation7 + $0x5c0] sm:$0xff]
        %v823 = vld [vmem:[#allocation7 + $0x5c8] sm:$0xff]
        %v824 = vld [vmem:[#allocation7 + $0x5d0] sm:$0xff]
        %v825 = vld [vmem:[#allocation7 + $0x5d8] sm:$0xff]
        %v826 = vld [vmem:[#allocation7 + $0x5e0] sm:$0xff]
        %v827 = vld [vmem:[#allocation7 + $0x5e8] sm:$0xff]
        %v828 = vld [vmem:[#allocation7 + $0x5f0] sm:$0xff]
        %v829 = vld [vmem:[#allocation7 + $0x5f8] sm:$0xff]
        %v830 = vld [vmem:[#allocation7 + $0x600] sm:$0xff]
        %v831 = vld [vmem:[#allocation7 + $0x608] sm:$0xff]
        %v832 = vld [vmem:[#allocation7 + $0x610] sm:$0xff]
        %v833 = vld [vmem:[#allocation7 + $0x618] sm:$0xff]
        %v834 = vld [vmem:[#allocation7 + $0x620] sm:$0xff]
        %v835 = vld [vmem:[#allocation7 + $0x628] sm:$0xff]
        %v836 = vld [vmem:[#allocation7 + $0x630] sm:$0xff]
        %v837 = vld [vmem:[#allocation7 + $0x638] sm:$0xff]
        %v838 = vld [vmem:[#allocation7 + $0x640] sm:$0xff]
        %v839 = vld [vmem:[#allocation7 + $0x648] sm:$0xff]
        %v840 = vld [vmem:[#allocation7 + $0x650] sm:$0xff]
        %v841 = vld [vmem:[#allocation7 + $0x658] sm:$0xff]
        %v842 = vld [vmem:[#allocation7 + $0x660] sm:$0xff]
        %v843 = vld [vmem:[#allocation7 + $0x668] sm:$0xff]
        %v844 = vld [vmem:[#allocation7 + $0x670] sm:$0xff]
        %v845 = vld [vmem:[#allocation7 + $0x678] sm:$0xff]
        %v846 = vld [vmem:[#allocation7 + $0x680] sm:$0xff]
        %v847 = vld [vmem:[#allocation7 + $0x688] sm:$0xff]
        %v848 = vld [vmem:[#allocation7 + $0x690] sm:$0xff]
        %v849 = vld [vmem:[#allocation7 + $0x698] sm:$0xff]
        %v850 = vld [vmem:[#allocation7 + $0x6a0] sm:$0xff]
        %v851 = vld [vmem:[#allocation7 + $0x6a8] sm:$0xff]
        %v852 = vld [vmem:[#allocation7 + $0x6b0] sm:$0xff]
        %v853 = vld [vmem:[#allocation7 + $0x6b8] sm:$0xff]
        %v854 = vld [vmem:[#allocation7 + $0x6c0] sm:$0xff]
        %v855 = vld [vmem:[#allocation7 + $0x6c8] sm:$0xff]
        %v856 = vld [vmem:[#allocation7 + $0x6d0] sm:$0xff]
        %v857 = vld [vmem:[#allocation7 + $0x6d8] sm:$0xff]
        %v858 = vld [vmem:[#allocation7 + $0x6e0] sm:$0xff]
        %v859 = vld [vmem:[#allocation7 + $0x6e8] sm:$0xff]
        %v860 = vld [vmem:[#allocation7 + $0x6f0] sm:$0xff]
        %v861 = vld [vmem:[#allocation7 + $0x6f8] sm:$0xff]
        %v862 = vld [vmem:[#allocation7 + $0x700] sm:$0xff]
        %v863 = vld [vmem:[#allocation7 + $0x708] sm:$0xff]
        %v864 = vld [vmem:[#allocation7 + $0x710] sm:$0xff]
        %v865 = vld [vmem:[#allocation7 + $0x718] sm:$0xff]
        %v866 = vld [vmem:[#allocation7 + $0x720] sm:$0xff]
        %v867 = vld [vmem:[#allocation7 + $0x728] sm:$0xff]
        %v868 = vld [vmem:[#allocation7 + $0x730] sm:$0xff]
        %v869 = vld [vmem:[#allocation7 + $0x738] sm:$0xff]
        %v870 = vld [vmem:[#allocation7 + $0x740] sm:$0xff]
        %v871 = vld [vmem:[#allocation7 + $0x748] sm:$0xff]
        %v872 = vld [vmem:[#allocation7 + $0x750] sm:$0xff]
        %v873 = vld [vmem:[#allocation7 + $0x758] sm:$0xff]
        %v874 = vld [vmem:[#allocation7 + $0x760] sm:$0xff]
        %v875 = vld [vmem:[#allocation7 + $0x768] sm:$0xff]
        %v876 = vld [vmem:[#allocation7 + $0x770] sm:$0xff]
        %v877 = vld [vmem:[#allocation7 + $0x778] sm:$0xff]
        %v878 = vld [vmem:[#allocation7 + $0x780] sm:$0xff]
        %v879 = vld [vmem:[#allocation7 + $0x788] sm:$0xff]
        %v880 = vld [vmem:[#allocation7 + $0x790] sm:$0xff]
        %v881 = vld [vmem:[#allocation7 + $0x798] sm:$0xff]
        %v882 = vld [vmem:[#allocation7 + $0x7a0] sm:$0xff]
        %v883 = vld [vmem:[#allocation7 + $0x7a8] sm:$0xff]
        %v884 = vld [vmem:[#allocation7 + $0x7b0] sm:$0xff]
        %v885 = vld [vmem:[#allocation7 + $0x7b8] sm:$0xff]
        %v886 = vld [vmem:[#allocation7 + $0x7c0] sm:$0xff]
        %v887 = vld [vmem:[#allocation7 + $0x7c8] sm:$0xff]
        %v888 = vld [vmem:[#allocation7 + $0x7d0] sm:$0xff]
        %v889 = vld [vmem:[#allocation7 + $0x7d8] sm:$0xff]
        %v890 = vld [vmem:[#allocation7 + $0x7e0] sm:$0xff]
        %v891 = vld [vmem:[#allocation7 + $0x7e8] sm:$0xff]
        %v892 = vld [vmem:[#allocation7 + $0x7f0] sm:$0xff]
        %v893 = vld [vmem:[#allocation7 + $0x7f8] sm:$0xff]
        %894 = vmatprep.subr.mxu0 %v639
        %895 = vmatpush1.msra.mxu0 %v638
        %896 = vmatprep.subr.mxu0 %v647
        %897 = vmatpush1.msra.mxu0 %v646
        %898 = vmatprep.subr.mxu0 %v655
        %899 = vmatpush1.msra.mxu0 %v654
        %900 = vmatprep.subr.mxu0 %v663
        %901 = vmatpush1.msra.mxu0 %v662
        %902 = vmatprep.subr.mxu0 %v671
        %903 = vmatpush1.msra.mxu0 %v670
        %904 = vmatprep.subr.mxu0 %v679
        %905 = vmatpush1.msra.mxu0 %v678
        %906 = vmatprep.subr.mxu0 %v687
        %907 = vmatpush1.msra.mxu0 %v686
        %908 = vmatprep.subr.mxu0 %v695
        %909 = vmatpush1.msra.mxu0 %v694
        %910 = vmatprep.subr.mxu0 %v703
        %911 = vmatpush1.msra.mxu0 %v702
        %912 = vmatprep.subr.mxu0 %v711
        %913 = vmatpush1.msra.mxu0 %v710
        %914 = vmatprep.subr.mxu0 %v719
        %915 = vmatpush1.msra.mxu0 %v718
        %916 = vmatprep.subr.mxu0 %v727
        %917 = vmatpush1.msra.mxu0 %v726
        %918 = vmatprep.subr.mxu0 %v735
        %919 = vmatpush1.msra.mxu0 %v734
        %920 = vmatprep.subr.mxu0 %v743
        %921 = vmatpush1.msra.mxu0 %v742
        %922 = vmatprep.subr.mxu0 %v751
        %923 = vmatpush1.msra.mxu0 %v750
        %924 = vmatprep.subr.mxu0 %v759
        %925 = vmatpush1.msra.mxu0 %v758
        %926 = vmatprep.subr.mxu0 %v767
        %927 = vmatpush1.msra.mxu0 %v766
        %928 = vmatprep.subr.mxu0 %v775
        %929 = vmatpush1.msra.mxu0 %v774
        %930 = vmatprep.subr.mxu0 %v783
        %931 = vmatpush1.msra.mxu0 %v782
        %932 = vmatprep.subr.mxu0 %v791
        %933 = vmatpush1.msra.mxu0 %v790
        %934 = vmatprep.subr.mxu0 %v799
        %935 = vmatpush1.msra.mxu0 %v798
        %936 = vmatprep.subr.mxu0 %v807
        %937 = vmatpush1.msra.mxu0 %v806
        %938 = vmatprep.subr.mxu0 %v815
        %939 = vmatpush1.msra.mxu0 %v814
        %940 = vmatprep.subr.mxu0 %v823
        %941 = vmatpush1.msra.mxu0 %v822
        %942 = vmatprep.subr.mxu0 %v831
        %943 = vmatpush1.msra.mxu0 %v830
        %944 = vmatprep.subr.mxu0 %v839
        %945 = vmatpush1.msra.mxu0 %v838
        %946 = vmatprep.subr.mxu0 %v847
        %947 = vmatpush1.msra.mxu0 %v846
        %948 = vmatprep.subr.mxu0 %v855
        %949 = vmatpush1.msra.mxu0 %v854
        %950 = vmatprep.subr.mxu0 %v863
        %951 = vmatpush1.msra.mxu0 %v862
        %952 = vmatprep.subr.mxu0 %v871
        %953 = vmatpush1.msra.mxu0 %v870
        %954 = vmatprep.subr.mxu0 %v879
        %955 = vmatpush1.msra.mxu0 %v878
        %956 = vmatprep.subr.mxu0 %v887
        %957 = vmatpush1.msra.mxu0 %v886
        %958 = vmatprep.mubr.f32.mxu0 %v319
        %959 = vmatmul.mubr.f32.gmra.mrb[0].mxu0 %v318
        %v960 = vpop.f32.mrb[0].mxu0
        %v961 = vadd.f32 %v421, %v960
        %v962 = vpop.f32.mrb[0].mxu0
        %v963 = vadd.f32 %v423, %v962
        %964 = vdwg.mxu0
        %965 = vmatprep.subr.mxu0 %v641
        %966 = vmatpush1.msra.mxu0 %v640
        %967 = vmatprep.subr.mxu0 %v649
        %968 = vmatpush1.msra.mxu0 %v648
        %969 = vmatprep.subr.mxu0 %v657
        %970 = vmatpush1.msra.mxu0 %v656
        %971 = vmatprep.subr.mxu0 %v665
        %972 = vmatpush1.msra.mxu0 %v664
        %973 = vmatprep.subr.mxu0 %v673
        %974 = vmatpush1.msra.mxu0 %v672
        %975 = vmatprep.subr.mxu0 %v681
        %976 = vmatpush1.msra.mxu0 %v680
        %977 = vmatprep.subr.mxu0 %v689
        %978 = vmatpush1.msra.mxu0 %v688
        %979 = vmatprep.subr.mxu0 %v697
        %980 = vmatpush1.msra.mxu0 %v696
        %981 = vmatprep.subr.mxu0 %v705
        %982 = vmatpush1.msra.mxu0 %v704
        %983 = vmatprep.subr.mxu0 %v713
        %984 = vmatpush1.msra.mxu0 %v712
        %985 = vmatprep.subr.mxu0 %v721
        %986 = vmatpush1.msra.mxu0 %v720
        %987 = vmatprep.subr.mxu0 %v729
        %988 = vmatpush1.msra.mxu0 %v728
        %989 = vmatprep.subr.mxu0 %v737
        %990 = vmatpush1.msra.mxu0 %v736
        %991 = vmatprep.subr.mxu0 %v745
        %992 = vmatpush1.msra.mxu0 %v744
        %993 = vmatprep.subr.mxu0 %v753
        %994 = vmatpush1.msra.mxu0 %v752
        %995 = vmatprep.subr.mxu0 %v761
        %996 = vmatpush1.msra.mxu0 %v760
        %997 = vmatprep.subr.mxu0 %v769
        %998 = vmatpush1.msra.mxu0 %v768
        %999 = vmatprep.subr.mxu0 %v777
        %1000 = vmatpush1.msra.mxu0 %v776
        %1001 = vmatprep.subr.mxu0 %v785
        %1002 = vmatpush1.msra.mxu0 %v784
        %1003 = vmatprep.subr.mxu0 %v793
        %1004 = vmatpush1.msra.mxu0 %v792
        %1005 = vmatprep.subr.mxu0 %v801
        %1006 = vmatpush1.msra.mxu0 %v800
        %1007 = vmatprep.subr.mxu0 %v809
        %1008 = vmatpush1.msra.mxu0 %v808
        %1009 = vmatprep.subr.mxu0 %v817
        %1010 = vmatpush1.msra.mxu0 %v816
        %1011 = vmatprep.subr.mxu0 %v825
        %1012 = vmatpush1.msra.mxu0 %v824
        %1013 = vmatprep.subr.mxu0 %v833
        %1014 = vmatpush1.msra.mxu0 %v832
        %1015 = vmatprep.subr.mxu0 %v841
        %1016 = vmatpush1.msra.mxu0 %v840
        %1017 = vmatprep.subr.mxu0 %v849
        %1018 = vmatpush1.msra.mxu0 %v848
        %1019 = vmatprep.subr.mxu0 %v857
        %1020 = vmatpush1.msra.mxu0 %v856
        %1021 = vmatprep.subr.mxu0 %v865
        %1022 = vmatpush1.msra.mxu0 %v864
        %1023 = vmatprep.subr.mxu0 %v873
        %1024 = vmatpush1.msra.mxu0 %v872
        %1025 = vmatprep.subr.mxu0 %v881
        %1026 = vmatpush1.msra.mxu0 %v880
        %1027 = vmatprep.subr.mxu0 %v889
        %1028 = vmatpush1.msra.mxu0 %v888
        %1029 = vmatprep.mubr.f32.mxu0 %v319
        %1030 = vmatmul.mubr.f32.gmra.mrb[0].mxu0 %v318
        %v1031 = vpop.f32.mrb[0].mxu0
        %v1032 = vadd.f32 %v492, %v1031
        %v1033 = vpop.f32.mrb[0].mxu0
        %v1034 = vadd.f32 %v494, %v1033
        %1035 = vdwg.mxu0
        %1036 = vmatprep.subr.mxu0 %v643
        %1037 = vmatpush1.msra.mxu0 %v642
        %1038 = vmatprep.subr.mxu0 %v651
        %1039 = vmatpush1.msra.mxu0 %v650
        %1040 = vmatprep.subr.mxu0 %v659
        %1041 = vmatpush1.msra.mxu0 %v658
        %1042 = vmatprep.subr.mxu0 %v667
        %1043 = vmatpush1.msra.mxu0 %v666
        %1044 = vmatprep.subr.mxu0 %v675
        %1045 = vmatpush1.msra.mxu0 %v674
        %1046 = vmatprep.subr.mxu0 %v683
        %1047 = vmatpush1.msra.mxu0 %v682
        %1048 = vmatprep.subr.mxu0 %v691
        %1049 = vmatpush1.msra.mxu0 %v690
        %1050 = vmatprep.subr.mxu0 %v699
        %1051 = vmatpush1.msra.mxu0 %v698
        %1052 = vmatprep.subr.mxu0 %v707
        %1053 = vmatpush1.msra.mxu0 %v706
        %1054 = vmatprep.subr.mxu0 %v715
        %1055 = vmatpush1.msra.mxu0 %v714
        %1056 = vmatprep.subr.mxu0 %v723
        %1057 = vmatpush1.msra.mxu0 %v722
        %1058 = vmatprep.subr.mxu0 %v731
        %1059 = vmatpush1.msra.mxu0 %v730
        %1060 = vmatprep.subr.mxu0 %v739
        %1061 = vmatpush1.msra.mxu0 %v738
        %1062 = vmatprep.subr.mxu0 %v747
        %1063 = vmatpush1.msra.mxu0 %v746
        %1064 = vmatprep.subr.mxu0 %v755
        %1065 = vmatpush1.msra.mxu0 %v754
        %1066 = vmatprep.subr.mxu0 %v763
        %1067 = vmatpush1.msra.mxu0 %v762
        %1068 = vmatprep.subr.mxu0 %v771
        %1069 = vmatpush1.msra.mxu0 %v770
        %1070 = vmatprep.subr.mxu0 %v779
        %1071 = vmatpush1.msra.mxu0 %v778
        %1072 = vmatprep.subr.mxu0 %v787
        %1073 = vmatpush1.msra.mxu0 %v786
        %1074 = vmatprep.subr.mxu0 %v795
        %1075 = vmatpush1.msra.mxu0 %v794
        %1076 = vmatprep.subr.mxu0 %v803
        %1077 = vmatpush1.msra.mxu0 %v802
        %1078 = vmatprep.subr.mxu0 %v811
        %1079 = vmatpush1.msra.mxu0 %v810
        %1080 = vmatprep.subr.mxu0 %v819
        %1081 = vmatpush1.msra.mxu0 %v818
        %1082 = vmatprep.subr.mxu0 %v827
        %1083 = vmatpush1.msra.mxu0 %v826
        %1084 = vmatprep.subr.mxu0 %v835
        %1085 = vmatpush1.msra.mxu0 %v834
        %1086 = vmatprep.subr.mxu0 %v843
        %1087 = vmatpush1.msra.mxu0 %v842
        %1088 = vmatprep.subr.mxu0 %v851
        %1089 = vmatpush1.msra.mxu0 %v850
        %1090 = vmatprep.subr.mxu0 %v859
        %1091 = vmatpush1.msra.mxu0 %v858
        %1092 = vmatprep.subr.mxu0 %v867
        %1093 = vmatpush1.msra.mxu0 %v866
        %1094 = vmatprep.subr.mxu0 %v875
        %1095 = vmatpush1.msra.mxu0 %v874
        %1096 = vmatprep.subr.mxu0 %v883
        %1097 = vmatpush1.msra.mxu0 %v882
        %1098 = vmatprep.subr.mxu0 %v891
        %1099 = vmatpush1.msra.mxu0 %v890
        %1100 = vmatprep.mubr.f32.mxu0 %v319
        %1101 = vmatmul.mubr.f32.gmra.mrb[0].mxu0 %v318
        %v1102 = vpop.f32.mrb[0].mxu0
        %v1103 = vadd.f32 %v563, %v1102
        %v1104 = vpop.f32.mrb[0].mxu0
        %v1105 = vadd.f32 %v565, %v1104
        %1106 = vdwg.mxu0
        %1107 = vmatprep.subr.mxu0 %v645
        %1108 = vmatpush1.msra.mxu0 %v644
        %1109 = vmatprep.subr.mxu0 %v653
        %1110 = vmatpush1.msra.mxu0 %v652
        %1111 = vmatprep.subr.mxu0 %v661
        %1112 = vmatpush1.msra.mxu0 %v660
        %1113 = vmatprep.subr.mxu0 %v669
        %1114 = vmatpush1.msra.mxu0 %v668
        %1115 = vmatprep.subr.mxu0 %v677
        %1116 = vmatpush1.msra.mxu0 %v676
        %1117 = vmatprep.subr.mxu0 %v685
        %1118 = vmatpush1.msra.mxu0 %v684
        %1119 = vmatprep.subr.mxu0 %v693
        %1120 = vmatpush1.msra.mxu0 %v692
        %1121 = vmatprep.subr.mxu0 %v701
        %1122 = vmatpush1.msra.mxu0 %v700
        %1123 = vmatprep.subr.mxu0 %v709
        %1124 = vmatpush1.msra.mxu0 %v708
        %1125 = vmatprep.subr.mxu0 %v717
        %1126 = vmatpush1.msra.mxu0 %v716
        %1127 = vmatprep.subr.mxu0 %v725
        %1128 = vmatpush1.msra.mxu0 %v724
        %1129 = vmatprep.subr.mxu0 %v733
        %1130 = vmatpush1.msra.mxu0 %v732
        %1131 = vmatprep.subr.mxu0 %v741
        %1132 = vmatpush1.msra.mxu0 %v740
        %1133 = vmatprep.subr.mxu0 %v749
        %1134 = vmatpush1.msra.mxu0 %v748
        %1135 = vmatprep.subr.mxu0 %v757
        %1136 = vmatpush1.msra.mxu0 %v756
        %1137 = vmatprep.subr.mxu0 %v765
        %1138 = vmatpush1.msra.mxu0 %v764
        %1139 = vmatprep.subr.mxu0 %v773
        %1140 = vmatpush1.msra.mxu0 %v772
        %1141 = vmatprep.subr.mxu0 %v781
        %1142 = vmatpush1.msra.mxu0 %v780
        %1143 = vmatprep.subr.mxu0 %v789
        %1144 = vmatpush1.msra.mxu0 %v788
        %1145 = vmatprep.subr.mxu0 %v797
        %1146 = vmatpush1.msra.mxu0 %v796
        %1147 = vmatprep.subr.mxu0 %v805
        %1148 = vmatpush1.msra.mxu0 %v804
        %1149 = vmatprep.subr.mxu0 %v813
        %1150 = vmatpush1.msra.mxu0 %v812
        %1151 = vmatprep.subr.mxu0 %v821
        %1152 = vmatpush1.msra.mxu0 %v820
        %1153 = vmatprep.subr.mxu0 %v829
        %1154 = vmatpush1.msra.mxu0 %v828
        %1155 = vmatprep.subr.mxu0 %v837
        %1156 = vmatpush1.msra.mxu0 %v836
        %1157 = vmatprep.subr.mxu0 %v845
        %1158 = vmatpush1.msra.mxu0 %v844
        %1159 = vmatprep.subr.mxu0 %v853
        %1160 = vmatpush1.msra.mxu0 %v852
        %1161 = vmatprep.subr.mxu0 %v861
        %1162 = vmatpush1.msra.mxu0 %v860
        %1163 = vmatprep.subr.mxu0 %v869
        %1164 = vmatpush1.msra.mxu0 %v868
        %1165 = vmatprep.subr.mxu0 %v877
        %1166 = vmatpush1.msra.mxu0 %v876
        %1167 = vmatprep.subr.mxu0 %v885
        %1168 = vmatpush1.msra.mxu0 %v884
        %1169 = vmatprep.subr.mxu0 %v893
        %1170 = vmatpush1.msra.mxu0 %v892
        %1171 = vmatprep.mubr.f32.mxu0 %v319
        %1172 = vmatmul.mubr.f32.gmra.mrb[0].mxu0 %v318
        %v1173 = vpop.f32.mrb[0].mxu0
        %v1174 = vadd.f32 %v634, %v1173
        %v1175 = vpop.f32.mrb[0].mxu0
        %v1176 = vadd.f32 %v636, %v1175
        %1177 = vdwg.mxu0
        %v1178 = vld [vmem:[%s3] sm:$0xff]
        %1180 = vset.pattern.permute.xlu0 0
        %1181 = vperm.xlu0 %1180, %v1178
        %v1182 = vpop.permute.xlu0 %1181
        %v1184 = vadd.f32 %v961, %v1182
        %v1185 = vadd.f32 %v963, %v1182
        %v1186 = vadd.f32 %v1032, %v1182
        %v1187 = vadd.f32 %v1034, %v1182
        %v1188 = vadd.f32 %v1103, %v1182
        %v1189 = vadd.f32 %v1105, %v1182
        %v1190 = vadd.f32 %v1174, %v1182
        %v1191 = vadd.f32 %v1176, %v1182
        %1192 = vst [vmem:[%s314] sm:$0xff] %v1184
        %1193 = vst [vmem:[%s314 + $0x8] sm:$0xff] %v1185
        %1194 = vst [vmem:[%s314 + $0x10] sm:$0xff] %v1186
        %1195 = vst [vmem:[%s314 + $0x18] sm:$0xff] %v1187
        %1196 = vst [vmem:[%s314 + $0x20] sm:$0xff] %v1188
        %1197 = vst [vmem:[%s314 + $0x28] sm:$0xff] %v1189
        %1198 = vst [vmem:[%s314 + $0x30] sm:$0xff] %v1190
        %1199 = vst [vmem:[%s314 + $0x38] sm:$0xff] %v1191
        %s1200 = sand.u32 %s166, 1
        %s1201 = scalar_lea.sflag [#allocation4], %s1200
        %s1202 = sand.u32 %s166, 1
        %s1203 = smul.addr %s1202, 64
        %s1204 = scalar_lea.vmem [#allocation8], %s1203
        // Predicated region
        $region53: #{tpu_custom_call.1} parent=39 // pred_check
          %p1205 = pneg %p176
        $region54: #{tpu_custom_call.1} parent=39 // pred_check_branch
          %1207 = sbr.rel (%p1205) target = $region56
        $region55: #{tpu_custom_call.1} parent=39 // pred_region
          %s1208 = smul.u32 8, %s30
          %s1210 = ssub.s32 1024, 1024
          %1211 = vsyncadd %s1201, %s1210
          %s1212 = smul.addr %s29, 8
          %s1213 = sadd.s32 %s1208, %s1212
          %s1214 = smul.addr %s1213, 128
          %s1215 = scalar_lea.hbm %s5, %s1214
          %s1217 = sshll.u32 %s1204, 4
          %s1218 = int_to_ptr.vmem [resolvable:$true] %s1217
          %1220 = dma.vmem_to_hbm [thread:$0]  %s1218, 1024, %s1215, %s1201
        $region56: #{tpu_custom_call.1} parent=39 // pred_fallthru
          _
      $region40: #{tpu_custom_call.1} parent=5 // pred_fallthru
        _
      %p1221 = scmp.le.s32.totalorder 2, %s20
      // Predicated region
      $region57: #{tpu_custom_call.1} parent=5 // pred_check
        %p1222 = pneg %p1221
      $region58: #{tpu_custom_call.1} parent=5 // pred_check_branch
        %1224 = sbr.rel (%p1222) target = $region60
      $region59: #{tpu_custom_call.1} parent=5 // pred_region
        %s1225 = ssub.s32 %s20, 2
        // Predicated region
        $region61: #{tpu_custom_call.1} parent=59 // pred_check
          %p1226 = pneg %p182
        $region62: #{tpu_custom_call.1} parent=59 // pred_check_branch
          %1228 = sbr.rel (%p1226) target = $region64
        $region63: #{tpu_custom_call.1} parent=59 // pred_region
          %s1229 = sand.u32 %s167, 1
          %s1230 = scalar_lea.sflag [#allocation4], %s1229
          %s1231 = sand.u32 %s167, 1
          %s1232 = smul.addr %s1231, 64
          %s1233 = scalar_lea.vmem [#allocation8], %s1232
          %1234 = dma.done %s1230, 1024
        $region64: #{tpu_custom_call.1} parent=59 // pred_fallthru
          _
      $region60: #{tpu_custom_call.1} parent=5 // pred_fallthru
        _
    $region6: #{tpu_custom_call.1} parent=1 // loop_footer
      %s24 = sadd.s32 1, %s20
    $region7: #{tpu_custom_call.1} parent=1 // loop_footer_branch
      %19 = sbr.rel target = $region3
    $region8: #{tpu_custom_call.1} parent=1 // loop_exit
      _
    %1235 = vsyncpa [#allocation3], 1
    %s1236 = scalar_lea.sflag [#allocation3], 1
    %1237 = vsyncpa %s1236, 1
    %1238 = vsyncpa [#allocation6], 1
    %s1239 = scalar_lea.sflag [#allocation6], 1
    %1240 = vsyncpa %s1239, 1
    %1241 = vsyncpa [#allocation4], 1
    %s1242 = scalar_lea.sflag [#allocation4], 1
    %1243 = vsyncpa %s1242, 1

</llo_original>
